<compile_context>
chip_gen: v5e
topology: v5e:2x2
jax: 0.10.0
libtpu: 0.0.40
codegen_flags: <defaults>
</compile_context>

<pallas_src>
import functools

import jax
import jax.numpy as jnp
from jax.experimental import pallas as pl
from jax.experimental.pallas import tpu as pltpu

_EPS = 1e-5  # nn.InstanceNorm1d default eps


def _elu(v):
    # ELU(alpha=1).  exp input is clamped so the untaken branch does no inf
    # work; exp(x)-1 in f32 is within ~1e-7 of expm1 for this use.
    return jnp.where(v > 0, v, jnp.exp(jnp.minimum(v, 0.0)) - 1.0)


def _tcn_block_kernel(x_ref, w1_ref, b1_ref, w2_ref, b2_ref, o_ref,
                      *, K, DIL, PAD, T_VALID, MXU_BF16):
    """x_ref / o_ref: (NB, C, Tp).  Processes NB batch elements per grid step."""
    NB, C, Tp = x_ref.shape
    full = (T_VALID == Tp)                     # no lane padding present
    inv_t = jnp.float32(1.0 / T_VALID)

    w1 = w1_ref[...].astype(jnp.float32)       # (C, K)   depthwise weights
    b1 = b1_ref[...].astype(jnp.float32)       # (C, 1)
    b2 = b2_ref[...].astype(jnp.float32)       # (Cout, 1)
    w2 = w2_ref[...]                           # (Cout, C) pointwise weights
    w2 = w2.astype(jnp.bfloat16) if MXU_BF16 else w2.astype(jnp.float32)

    if not full:
        t_row = jax.lax.broadcasted_iota(jnp.int32, (1, Tp), 1)
        valid_f = (t_row < T_VALID).astype(jnp.float32)     # (1, Tp)

    def _inorm(v):
        # Single-pass InstanceNorm (biased variance) over the valid time steps.
        vm = v if full else v * valid_f
        s1 = jnp.sum(vm, axis=-1, keepdims=True) * inv_t
        s2 = jnp.sum(vm * vm, axis=-1, keepdims=True) * inv_t
        var = jnp.maximum(s2 - s1 * s1, 0.0)
        return (v - s1) * jax.lax.rsqrt(var + _EPS)

    for n in range(NB):                        # static unroll over folded batch
        x = x_ref[n].astype(jnp.float32)       # (C, Tp)

        # ---- IN1 + ELU1 ----
        y = _elu(_inorm(x))
        if not full:
            y = y * valid_f                    # lane padding = true conv zero-pad

        # ---- depthwise Conv1d (groups=C): static lane shifts, no masks ----
        acc = jnp.zeros((C, Tp), jnp.float32)
        for k in range(K):
            off = k * DIL - PAD                # static python int
            if abs(off) >= T_VALID:
                continue                       # tap cannot reach a valid output
            if off == 0:
                tap = y
            elif off > 0:
                tap = jnp.concatenate(
                    [y[:, off:], jnp.zeros((C, off), jnp.float32)], axis=1)
            else:
                tap = jnp.concatenate(
                    [jnp.zeros((C, -off), jnp.float32), y[:, :Tp + off]], axis=1)
            acc = acc + w1[:, k:k + 1] * tap
        acc = acc + b1

        # ---- IN2 + ELU2 ----
        y2 = _elu(_inorm(acc))

        # ---- 1x1 Conv1d on the MXU (bf16 operands, f32 accumulate) ----
        if MXU_BF16:
            y2 = y2.astype(jnp.bfloat16)
        z = jnp.dot(w2, y2, preferred_element_type=jnp.float32)   # (Cout, Tp)

        # ---- residual ----
        o_ref[n] = (x + z + b2).astype(o_ref.dtype)


def _default_batch_block(n, c, tp):
    per_elem = c * tp * 4                      # f32 working set per batch element
    cap = max(1, (16 << 20) // (8 * per_elem))  # keep live copies well under VMEM
    nb = min(n, cap, 8)                        # bound kernel unrolling
    if n >= 2:
        nb = min(nb, (n + 1) // 2)             # keep >=2 grid steps (v7x megacore)
    return max(1, nb)


def tcn_block(x, w1, b1, w2, b2, *, kernel_size=3, dilation=1, causal=False,
              batch_block=None, mxu_bf16=True):
    """x: (N, C, T).
    w1: (C, K)    depthwise weights  (Conv1d weight (C,1,K) squeezed)
    b1: (C, 1)    depthwise bias
    w2: (Cout, C) pointwise weights  (Conv1d weight (Cout,C,1) squeezed)
    b2: (Cout, 1) pointwise bias
    """
    N, C, T = x.shape
    K = kernel_size
    Cout = w2.shape[0]
    assert Cout == C, "residual add requires out_dims == in_dims"
    assert w1.shape == (C, K) and b1.shape == (C, 1) and b2.shape == (Cout, 1)

    # Same padding rule as the PyTorch module; the causal output trim is folded
    # into the tap offsets (all offsets <= 0 when causal).
    pad = dilation * (K - 1) // 2 if not causal else dilation * (K - 1)

    Tp = ((T + 127) // 128) * 128              # lane-dense stores / vregs
    NB = batch_block or _default_batch_block(N, C, Tp)
    G = pl.cdiv(N, NB)
    Np = G * NB

    xp = x
    if (Np, Tp) != (N, T):
        xp = jnp.pad(x, ((0, Np - N), (0, 0), (0, Tp - T)))

    kernel = functools.partial(
        _tcn_block_kernel, K=K, DIL=dilation, PAD=pad,
        T_VALID=T, MXU_BF16=mxu_bf16)

    block_bytes = NB * C * Tp * 4
    vmem_limit = int(min(64 << 20, max(32 << 20, 12 * block_bytes + (2 << 20))))

    out = pl.pallas_call(
        kernel,
        out_shape=jax.ShapeDtypeStruct((Np, C, Tp), x.dtype),
        grid_spec=pltpu.PrefetchScalarGridSpec(
            num_scalar_prefetch=0,
            grid=(G,),
            in_specs=[
                pl.BlockSpec((NB, C, Tp), lambda g: (g, 0, 0)),
                pl.BlockSpec((C, K), lambda g: (0, 0)),
                pl.BlockSpec((C, 1), lambda g: (0, 0)),
                pl.BlockSpec((Cout, C), lambda g: (0, 0)),
                pl.BlockSpec((Cout, 1), lambda g: (0, 0)),
            ],
            out_specs=pl.BlockSpec((NB, C, Tp), lambda g: (g, 0, 0)),
        ),
        compiler_params=pltpu.CompilerParams(
            dimension_semantics=("parallel",),
            vmem_limit_bytes=vmem_limit),
    )(xp, w1, b1, w2, b2)

    if (Np, Tp) != (N, T):
        out = out[:N, :, :T]
    return out


def _reference(x, w1, b1, w2, b2, *, kernel_size, dilation, causal):
    """Pure-JAX reference mirroring the PyTorch forward."""
    x = x.astype(jnp.float32)
    K = kernel_size
    pad = dilation * (K - 1) // 2 if not causal else dilation * (K - 1)

    def inorm(v):
        mean = jnp.mean(v, axis=-1, keepdims=True)
        var = jnp.mean((v - mean) ** 2, axis=-1, keepdims=True)
        return (v - mean) * jax.lax.rsqrt(var + _EPS)

    y = _elu(inorm(x))
    T = x.shape[-1]
    L = T + 2 * pad - dilation * (K - 1)
    yp = jnp.pad(y, ((0, 0), (0, 0), (pad, pad)))
    acc = jnp.zeros(x.shape[:2] + (L,), jnp.float32)
    for k in range(K):
        acc = acc + w1[None, :, k:k + 1] * yp[:, :, k * dilation:k * dilation + L]
    acc = acc + b1[None]
    if causal and pad > 0:
        acc = acc[:, :, :-pad]
    y2 = _elu(inorm(acc))
    y2 = jnp.einsum("oc,nct->not", w2, y2) + b2[None]
    return x + y2


if __name__ == "__main__":
    # Small shapes consistent with the module (Conv1d input is (N, C, T)).
    N, C, T = 2, 32, 64
    K, DIL = 3, 1

    key = jax.random.PRNGKey(0)
    kx, k1, k2, k3, k4 = jax.random.split(key, 5)

    x = jax.random.normal(kx, (N, C, T), dtype=jnp.float32)
    # Synthetic parameters with nn.Conv1d shapes squeezed:
    #   dconv1.weight (C,1,K) -> (C,K);  dconv1.bias (C,) -> (C,1)
    #   dconv2.weight (C,C,1) -> (C,C);  dconv2.bias (C,) -> (C,1)
    w1 = jax.random.normal(k1, (C, K), dtype=jnp.float32) * 0.3
    b1 = jax.random.normal(k2, (C, 1), dtype=jnp.float32) * 0.1
    w2 = jax.random.normal(k3, (C, C), dtype=jnp.float32) * (1.0 / jnp.sqrt(C))
    b2 = jax.random.normal(k4, (C, 1), dtype=jnp.float32) * 0.1

    checks = [
        dict(causal=False, mxu_bf16=False, tol=1e-3),   # exact f32 path
        dict(causal=False, mxu_bf16=True, tol=3e-2),    # bf16 MXU operands
        dict(causal=True, mxu_bf16=True, tol=3e-2),     # causal padding path
    ]
    for cfg in checks:
        out = tcn_block(x, w1, b1, w2, b2, kernel_size=K, dilation=DIL,
                        causal=cfg["causal"], mxu_bf16=cfg["mxu_bf16"])
        out = jax.block_until_ready(out)
        ref = _reference(x, w1, b1, w2, b2, kernel_size=K, dilation=DIL,
                         causal=cfg["causal"])
        assert out.shape == (N, C, T)
        err = float(jnp.max(jnp.abs(out - ref)))
        assert jnp.allclose(out, ref, atol=cfg["tol"], rtol=cfg["tol"]), (cfg, err)

    print("KERNEL_OK")
</pallas_src>

<mosaic_0001>
module attributes {stable_mosaic.version = 11 : i64} {
  func.func @_tcn_block_kernel(%arg0: i32, %arg1: memref<1x32x128xf32, #tpu.memory_space<vmem>>, %arg2: memref<32x3xf32, #tpu.memory_space<vmem>>, %arg3: memref<32x1xf32, #tpu.memory_space<vmem>>, %arg4: memref<32x32xf32, #tpu.memory_space<vmem>>, %arg5: memref<32x1xf32, #tpu.memory_space<vmem>>, %arg6: memref<1x32x128xf32, #tpu.memory_space<vmem>>) attributes {dimension_semantics = [#tpu.dimension_semantics<parallel>], iteration_bounds = array<i64: 2>, scalar_prefetch = 0 : i64, scratch_operands = 0 : i64, tpu.core_type = #tpu.core_type<tc>, window_params = [{transform_indices = @transform_0, window_bounds = array<i64: 1, 32, 128>}, {pipeline_mode = #tpu.pipeline_mode<synchronous>, transform_indices = @transform_1, window_bounds = array<i64: 32, 3>}, {pipeline_mode = #tpu.pipeline_mode<synchronous>, transform_indices = @transform_2, window_bounds = array<i64: 32, 1>}, {pipeline_mode = #tpu.pipeline_mode<synchronous>, transform_indices = @transform_3, window_bounds = array<i64: 32, 32>}, {pipeline_mode = #tpu.pipeline_mode<synchronous>, transform_indices = @transform_4, window_bounds = array<i64: 32, 1>}, {transform_indices = @transform_5, window_bounds = array<i64: 1, 32, 128>}]} {
    %c0 = arith.constant 0 : index
    %c0_0 = arith.constant 0 : index
    %0 = vector.load %arg2[%c0, %c0_0] : memref<32x3xf32, #tpu.memory_space<vmem>>, vector<32x3xf32>
    %c0_1 = arith.constant 0 : index
    %c0_2 = arith.constant 0 : index
    %1 = vector.load %arg3[%c0_1, %c0_2] : memref<32x1xf32, #tpu.memory_space<vmem>>, vector<32x1xf32>
    %c0_3 = arith.constant 0 : index
    %c0_4 = arith.constant 0 : index
    %2 = vector.load %arg5[%c0_3, %c0_4] : memref<32x1xf32, #tpu.memory_space<vmem>>, vector<32x1xf32>
    %c0_5 = arith.constant 0 : index
    %c0_6 = arith.constant 0 : index
    %3 = vector.load %arg4[%c0_5, %c0_6] : memref<32x32xf32, #tpu.memory_space<vmem>>, vector<32x32xf32>
    %4 = tpu.iota {dimensions = array<i32: 1>} : vector<1x128xi32>
    %c64_i32 = arith.constant 64 : i32
    %5 = vector.broadcast %c64_i32 : i32 to vector<1x128xi32>
    %6 = arith.cmpi slt, %4, %5 : vector<1x128xi32>
    %7 = arith.extui %6 : vector<1x128xi1> to vector<1x128xi32>
    %8 = arith.sitofp %7 : vector<1x128xi32> to vector<1x128xf32>
    %c0_7 = arith.constant 0 : index
    %c0_8 = arith.constant 0 : index
    %c0_9 = arith.constant 0 : index
    %9 = vector.load %arg1[%c0_7, %c0_8, %c0_9] : memref<1x32x128xf32, #tpu.memory_space<vmem>>, vector<1x32x128xf32>
    %10 = vector.shape_cast %9 : vector<1x32x128xf32> to vector<32x128xf32>
    %11 = vector.broadcast %8 : vector<1x128xf32> to vector<32x128xf32>
    %12 = arith.mulf %10, %11 : vector<32x128xf32>
    %cst = arith.constant dense<0.000000e+00> : vector<32xf32>
    %13 = vector.multi_reduction <add>, %12, %cst [1] : vector<32x128xf32> to vector<32xf32>
    %14 = vector.shape_cast %13 : vector<32xf32> to vector<32x1xf32>
    %cst_10 = arith.constant 1.562500e-02 : f32
    %15 = vector.broadcast %cst_10 : f32 to vector<32x1xf32>
    %16 = arith.mulf %14, %15 : vector<32x1xf32>
    %17 = arith.mulf %12, %12 : vector<32x128xf32>
    %cst_11 = arith.constant dense<0.000000e+00> : vector<32xf32>
    %18 = vector.multi_reduction <add>, %17, %cst_11 [1] : vector<32x128xf32> to vector<32xf32>
    %19 = vector.shape_cast %18 : vector<32xf32> to vector<32x1xf32>
    %cst_12 = arith.constant 1.562500e-02 : f32
    %20 = vector.broadcast %cst_12 : f32 to vector<32x1xf32>
    %21 = arith.mulf %19, %20 : vector<32x1xf32>
    %22 = arith.mulf %16, %16 : vector<32x1xf32>
    %23 = arith.subf %21, %22 : vector<32x1xf32>
    %cst_13 = arith.constant 0.000000e+00 : f32
    %24 = vector.broadcast %cst_13 : f32 to vector<32x1xf32>
    %25 = arith.maximumf %23, %24 : vector<32x1xf32>
    %26 = vector.broadcast %16 : vector<32x1xf32> to vector<32x128xf32>
    %27 = arith.subf %10, %26 : vector<32x128xf32>
    %cst_14 = arith.constant 9.99999974E-6 : f32
    %28 = vector.broadcast %cst_14 : f32 to vector<32x1xf32>
    %29 = arith.addf %25, %28 : vector<32x1xf32>
    %30 = math.rsqrt %29 : vector<32x1xf32>
    %31 = vector.broadcast %30 : vector<32x1xf32> to vector<32x128xf32>
    %32 = arith.mulf %27, %31 : vector<32x128xf32>
    %cst_15 = arith.constant 0.000000e+00 : f32
    %33 = vector.broadcast %cst_15 : f32 to vector<32x128xf32>
    %34 = arith.cmpf ogt, %32, %33 : vector<32x128xf32>
    %cst_16 = arith.constant 0.000000e+00 : f32
    %35 = vector.broadcast %cst_16 : f32 to vector<32x128xf32>
    %36 = arith.minimumf %32, %35 : vector<32x128xf32>
    %37 = math.exp %36 : vector<32x128xf32>
    %cst_17 = arith.constant 1.000000e+00 : f32
    %38 = vector.broadcast %cst_17 : f32 to vector<32x128xf32>
    %39 = arith.subf %37, %38 : vector<32x128xf32>
    %40 = arith.select %34, %32, %39 : vector<32x128xi1>, vector<32x128xf32>
    %41 = vector.broadcast %8 : vector<1x128xf32> to vector<32x128xf32>
    %42 = arith.mulf %40, %41 : vector<32x128xf32>
    %cst_18 = arith.constant 0.000000e+00 : f32
    %43 = vector.broadcast %cst_18 : f32 to vector<32x128xf32>
    %cst_19 = arith.constant 0.000000e+00 : f32
    %44 = vector.broadcast %cst_19 : f32 to vector<32x1xf32>
    %45 = vector.extract_strided_slice %42 {offsets = [0, 0], sizes = [32, 127], strides = [1, 1]} : vector<32x128xf32> to vector<32x127xf32>
    %46 = tpu.concatenate %44, %45 in 1 : vector<32x1xf32>, vector<32x127xf32> -> vector<32x128xf32>
    %47 = vector.extract_strided_slice %0 {offsets = [0, 0], sizes = [32, 1], strides = [1, 1]} : vector<32x3xf32> to vector<32x1xf32>
    %48 = vector.broadcast %47 : vector<32x1xf32> to vector<32x128xf32>
    %49 = arith.mulf %48, %46 : vector<32x128xf32>
    %50 = arith.addf %43, %49 : vector<32x128xf32>
    %51 = vector.extract_strided_slice %0 {offsets = [0, 1], sizes = [32, 1], strides = [1, 1]} : vector<32x3xf32> to vector<32x1xf32>
    %52 = vector.broadcast %51 : vector<32x1xf32> to vector<32x128xf32>
    %53 = arith.mulf %52, %42 : vector<32x128xf32>
    %54 = arith.addf %50, %53 : vector<32x128xf32>
    %55 = vector.extract_strided_slice %42 {offsets = [0, 1], sizes = [32, 127], strides = [1, 1]} : vector<32x128xf32> to vector<32x127xf32>
    %cst_20 = arith.constant 0.000000e+00 : f32
    %56 = vector.broadcast %cst_20 : f32 to vector<32x1xf32>
    %57 = tpu.concatenate %55, %56 in 1 : vector<32x127xf32>, vector<32x1xf32> -> vector<32x128xf32>
    %58 = vector.extract_strided_slice %0 {offsets = [0, 2], sizes = [32, 1], strides = [1, 1]} : vector<32x3xf32> to vector<32x1xf32>
    %59 = vector.broadcast %58 : vector<32x1xf32> to vector<32x128xf32>
    %60 = arith.mulf %59, %57 : vector<32x128xf32>
    %61 = arith.addf %54, %60 : vector<32x128xf32>
    %62 = vector.broadcast %1 : vector<32x1xf32> to vector<32x128xf32>
    %63 = arith.addf %61, %62 : vector<32x128xf32>
    %64 = vector.broadcast %8 : vector<1x128xf32> to vector<32x128xf32>
    %65 = arith.mulf %63, %64 : vector<32x128xf32>
    %cst_21 = arith.constant dense<0.000000e+00> : vector<32xf32>
    %66 = vector.multi_reduction <add>, %65, %cst_21 [1] : vector<32x128xf32> to vector<32xf32>
    %67 = vector.shape_cast %66 : vector<32xf32> to vector<32x1xf32>
    %cst_22 = arith.constant 1.562500e-02 : f32
    %68 = vector.broadcast %cst_22 : f32 to vector<32x1xf32>
    %69 = arith.mulf %67, %68 : vector<32x1xf32>
    %70 = arith.mulf %65, %65 : vector<32x128xf32>
    %cst_23 = arith.constant dense<0.000000e+00> : vector<32xf32>
    %71 = vector.multi_reduction <add>, %70, %cst_23 [1] : vector<32x128xf32> to vector<32xf32>
    %72 = vector.shape_cast %71 : vector<32xf32> to vector<32x1xf32>
    %cst_24 = arith.constant 1.562500e-02 : f32
    %73 = vector.broadcast %cst_24 : f32 to vector<32x1xf32>
    %74 = arith.mulf %72, %73 : vector<32x1xf32>
    %75 = arith.mulf %69, %69 : vector<32x1xf32>
    %76 = arith.subf %74, %75 : vector<32x1xf32>
    %cst_25 = arith.constant 0.000000e+00 : f32
    %77 = vector.broadcast %cst_25 : f32 to vector<32x1xf32>
    %78 = arith.maximumf %76, %77 : vector<32x1xf32>
    %79 = vector.broadcast %69 : vector<32x1xf32> to vector<32x128xf32>
    %80 = arith.subf %63, %79 : vector<32x128xf32>
    %cst_26 = arith.constant 9.99999974E-6 : f32
    %81 = vector.broadcast %cst_26 : f32 to vector<32x1xf32>
    %82 = arith.addf %78, %81 : vector<32x1xf32>
    %83 = math.rsqrt %82 : vector<32x1xf32>
    %84 = vector.broadcast %83 : vector<32x1xf32> to vector<32x128xf32>
    %85 = arith.mulf %80, %84 : vector<32x128xf32>
    %cst_27 = arith.constant 0.000000e+00 : f32
    %86 = vector.broadcast %cst_27 : f32 to vector<32x128xf32>
    %87 = arith.cmpf ogt, %85, %86 : vector<32x128xf32>
    %cst_28 = arith.constant 0.000000e+00 : f32
    %88 = vector.broadcast %cst_28 : f32 to vector<32x128xf32>
    %89 = arith.minimumf %85, %88 : vector<32x128xf32>
    %90 = math.exp %89 : vector<32x128xf32>
    %cst_29 = arith.constant 1.000000e+00 : f32
    %91 = vector.broadcast %cst_29 : f32 to vector<32x128xf32>
    %92 = arith.subf %90, %91 : vector<32x128xf32>
    %93 = arith.select %87, %85, %92 : vector<32x128xi1>, vector<32x128xf32>
    %cst_30 = arith.constant dense<0.000000e+00> : vector<32x128xf32>
    %94 = tpu.matmul %3, %93, %cst_30 {dimension_numbers = #tpu.dot_dimension_numbers<[1], [0], [0], [1], [0, 0, 1, 1], [], []>} : vector<32x32xf32>, vector<32x128xf32>, vector<32x128xf32> -> vector<32x128xf32>
    %95 = arith.addf %10, %94 : vector<32x128xf32>
    %96 = vector.broadcast %2 : vector<32x1xf32> to vector<32x128xf32>
    %97 = arith.addf %95, %96 : vector<32x128xf32>
    %c0_31 = arith.constant 0 : index
    %c0_32 = arith.constant 0 : index
    %c0_33 = arith.constant 0 : index
    %98 = vector.load %arg6[%c0_31, %c0_32, %c0_33] : memref<1x32x128xf32, #tpu.memory_space<vmem>>, vector<1x32x128xf32>
    %99 = vector.shape_cast %98 : vector<1x32x128xf32> to vector<32x128xf32>
    %100 = vector.shape_cast %97 : vector<32x128xf32> to vector<1x32x128xf32>
    tpu.vector_store %arg6[%c0_31, %c0_32, %c0_33], %100 {strides = array<i32>} : memref<1x32x128xf32, #tpu.memory_space<vmem>>, vector<1x32x128xf32>,
    return
  }
  func.func @transform_0(%arg0: i32) -> (i32, i32, i32) {
    %c0_i32 = arith.constant 0 : i32
    %c0_i32_0 = arith.constant 0 : i32
    %c0_i32_1 = arith.constant 0 : i32
    return %arg0, %c0_i32, %c0_i32_0 : i32, i32, i32
  }
  func.func @transform_1(%arg0: i32) -> (i32, i32) {
    %c0_i32 = arith.constant 0 : i32
    %c0_i32_0 = arith.constant 0 : i32
    %c0_i32_1 = arith.constant 0 : i32
    return %c0_i32, %c0_i32_0 : i32, i32
  }
  func.func @transform_2(%arg0: i32) -> (i32, i32) {
    %c0_i32 = arith.constant 0 : i32
    %c0_i32_0 = arith.constant 0 : i32
    %c0_i32_1 = arith.constant 0 : i32
    return %c0_i32, %c0_i32_0 : i32, i32
  }
  func.func @transform_3(%arg0: i32) -> (i32, i32) {
    %c0_i32 = arith.constant 0 : i32
    %c0_i32_0 = arith.constant 0 : i32
    %c0_i32_1 = arith.constant 0 : i32
    return %c0_i32, %c0_i32_0 : i32, i32
  }
  func.func @transform_4(%arg0: i32) -> (i32, i32) {
    %c0_i32 = arith.constant 0 : i32
    %c0_i32_0 = arith.constant 0 : i32
    %c0_i32_1 = arith.constant 0 : i32
    return %c0_i32, %c0_i32_0 : i32, i32
  }
  func.func @transform_5(%arg0: i32) -> (i32, i32, i32) {
    %c0_i32 = arith.constant 0 : i32
    %c0_i32_0 = arith.constant 0 : i32
    %c0_i32_1 = arith.constant 0 : i32
    return %arg0, %c0_i32, %c0_i32_0 : i32, i32, i32
  }
}

</mosaic_0001>

<llo_original>
// kernel: tpu_custom_call.1
$region0: #{tpu_custom_call.1}
  #allocation0 [shape = 'u32[]', space=smem, size = 0x4, offset = 0x4, fixed_abs, tag = 'smem constant byte address 0x4 - core index']
  #allocation1 [shape = 'u32[72,128]{1,0:T(1,128)}', space=vmem, size = 0x9000, scoped, tag = 'internal scratch']
  %s0 = inlined_call_operand.vmem [shape: f32[2,32,128], index: 0, kind: input, shape index: {}]
  %s1 = inlined_call_operand.vmem [shape: f32[32,3], index: 1, kind: input, shape index: {}]
  %s2 = inlined_call_operand.vmem [shape: f32[32,1], index: 2, kind: input, shape index: {}]
  %s3 = inlined_call_operand.vmem [shape: f32[32,32], index: 3, kind: input, shape index: {}]
  %s4 = inlined_call_operand.vmem [shape: f32[32,1], index: 4, kind: input, shape index: {}]
  %s5 = inlined_call_operand.hbm [shape: f32[2,32,128], index: 5, kind: output, shape index: {}]
  %s6 = sld [smem:[#allocation0]]
  $region53: #{tpu_custom_call.1} parent=0
    _
  %s8 = ssub.s32 1, %s6
  %s9 = scalar_select 0, %s8, %s6
  $region1: #{tpu_custom_call.1} parent=0
    #allocation2 [shape = 'u8[32768]{0}', space=vmem, size = 0x8000, scoped, tag = 'output window, operand 0']
    #allocation3 [shape = 's32[2]{0}', space=sflag, size = 0x8, scoped, tag = 'scoped memory for tpu_custom_call.1']
    %10 = vsyncpa [#allocation3], 0
    %s11 = scalar_lea.sflag [#allocation3], 1
    %12 = vsyncpa %s11, 0
    loop: start=0, step=1, limit=4
    $region2: #{tpu_custom_call.1} parent=1 // loop_pre_header
      _
    $region3: #{tpu_custom_call.1} parent=1 // loop_header
      %s14 = sphi 0, %s18
      %p15 = scmp.ge.s32.totalorder %s14, 4
      %s24 = sphi 0, %s26
      %s27 = sphi 0, %s24
      %s28 = sphi 0, %s27
      %s44 = sphi 0, %s28
      %s48 = sphi 0, %s48
      %s50 = sphi 0, %s48
      %s51 = sphi 0, %s50
      %s65 = sphi 0, %s51
      %s69 = sphi 0, %s69
      %s71 = sphi 0, %s69
      %s72 = sphi 0, %s71
      %s86 = sphi 0, %s72
      %s90 = sphi 0, %s90
      %s92 = sphi 0, %s90
      %s93 = sphi 0, %s92
      %s107 = sphi 0, %s93
      %s111 = sphi 0, %s111
      %s113 = sphi 0, %s111
      %s114 = sphi 0, %s113
      %s128 = sphi 0, %s114
      %s134 = sphi 0, %s136
      %s137 = sphi 0, %s134
      %s138 = sphi 0, %s137
      %s154 = sphi 0, %s138
    $region4: #{tpu_custom_call.1} parent=1 // loop_header_branch
      %17 = sbr.rel (%p15) target = $region8
    $region5: #{tpu_custom_call.1} parent=1 // loop_body
      %s19 = ssub.s32 %s14, 1
      %s20 = ssub.s32 %s14, 2
      %s21 = sadd.s32 %s14, 1
      %s22 = ssub.s32 %s14, %s21
      %p23 = scmp.eq.s32.totalorder %s22, 0
      %s25 = sadd.s32 %s24, 1
      %s26 = scalar_select %p23, %s24, %s25
      %p29 = pneg %p23
      %p30 = scmp.eq.s32.totalorder %s14, 1
      %p31 = por %p29, %p30
      %p32 = scmp.ne.s32.totalorder %s24, %s27
      %p33 = scmp.eq.s32.totalorder %s14, 0
      %p34 = por %p32, %p33
      %p35 = scmp.ne.s32.totalorder %s24, %s27
      %p36 = scmp.eq.s32.totalorder %s19, 1
      %p37 = por %p35, %p36
      %p38 = scmp.ne.s32.totalorder %s27, %s28
      %p39 = scmp.eq.s32.totalorder %s19, 0
      %p40 = por %p38, %p39
      %p41 = scmp.ne.s32.totalorder %s27, %s28
      %p42 = scmp.eq.s32.totalorder %s20, 1
      %p43 = por %p41, %p42
      %p45 = scmp.ne.s32.totalorder %s28, %s44
      %p46 = scmp.eq.s32.totalorder %s20, 0
      %p47 = por %p45, %p46
      %s49 = sadd.s32 %s48, 1
      %p52 = scmp.eq.s32.totalorder %s14, 1
      %p53 = scmp.ne.s32.totalorder %s48, %s50
      %p54 = scmp.eq.s32.totalorder %s14, 0
      %p55 = por %p53, %p54
      %p56 = scmp.ne.s32.totalorder %s48, %s50
      %p57 = scmp.eq.s32.totalorder %s19, 1
      %p58 = por %p56, %p57
      %p59 = scmp.ne.s32.totalorder %s50, %s51
      %p60 = scmp.eq.s32.totalorder %s19, 0
      %p61 = por %p59, %p60
      %p62 = scmp.ne.s32.totalorder %s50, %s51
      %p63 = scmp.eq.s32.totalorder %s20, 1
      %p64 = por %p62, %p63
      %p66 = scmp.ne.s32.totalorder %s51, %s65
      %p67 = scmp.eq.s32.totalorder %s20, 0
      %p68 = por %p66, %p67
      %s70 = sadd.s32 %s69, 1
      %p73 = scmp.eq.s32.totalorder %s14, 1
      %p74 = scmp.ne.s32.totalorder %s69, %s71
      %p75 = scmp.eq.s32.totalorder %s14, 0
      %p76 = por %p74, %p75
      %p77 = scmp.ne.s32.totalorder %s69, %s71
      %p78 = scmp.eq.s32.totalorder %s19, 1
      %p79 = por %p77, %p78
      %p80 = scmp.ne.s32.totalorder %s71, %s72
      %p81 = scmp.eq.s32.totalorder %s19, 0
      %p82 = por %p80, %p81
      %p83 = scmp.ne.s32.totalorder %s71, %s72
      %p84 = scmp.eq.s32.totalorder %s20, 1
      %p85 = por %p83, %p84
      %p87 = scmp.ne.s32.totalorder %s72, %s86
      %p88 = scmp.eq.s32.totalorder %s20, 0
      %p89 = por %p87, %p88
      %s91 = sadd.s32 %s90, 1
      %p94 = scmp.eq.s32.totalorder %s14, 1
      %p95 = scmp.ne.s32.totalorder %s90, %s92
      %p96 = scmp.eq.s32.totalorder %s14, 0
      %p97 = por %p95, %p96
      %p98 = scmp.ne.s32.totalorder %s90, %s92
      %p99 = scmp.eq.s32.totalorder %s19, 1
      %p100 = por %p98, %p99
      %p101 = scmp.ne.s32.totalorder %s92, %s93
      %p102 = scmp.eq.s32.totalorder %s19, 0
      %p103 = por %p101, %p102
      %p104 = scmp.ne.s32.totalorder %s92, %s93
      %p105 = scmp.eq.s32.totalorder %s20, 1
      %p106 = por %p104, %p105
      %p108 = scmp.ne.s32.totalorder %s93, %s107
      %p109 = scmp.eq.s32.totalorder %s20, 0
      %p110 = por %p108, %p109
      %s112 = sadd.s32 %s111, 1
      %p115 = scmp.eq.s32.totalorder %s14, 1
      %p116 = scmp.ne.s32.totalorder %s111, %s113
      %p117 = scmp.eq.s32.totalorder %s14, 0
      %p118 = por %p116, %p117
      %p119 = scmp.ne.s32.totalorder %s111, %s113
      %p120 = scmp.eq.s32.totalorder %s19, 1
      %p121 = por %p119, %p120
      %p122 = scmp.ne.s32.totalorder %s113, %s114
      %p123 = scmp.eq.s32.totalorder %s19, 0
      %p124 = por %p122, %p123
      %p125 = scmp.ne.s32.totalorder %s113, %s114
      %p126 = scmp.eq.s32.totalorder %s20, 1
      %p127 = por %p125, %p126
      %p129 = scmp.ne.s32.totalorder %s114, %s128
      %p130 = scmp.eq.s32.totalorder %s20, 0
      %p131 = por %p129, %p130
      %s132 = ssub.s32 %s14, %s21
      %p133 = scmp.eq.s32.totalorder %s132, 0
      %s135 = sadd.s32 %s134, 1
      %s136 = scalar_select %p133, %s134, %s135
      %p139 = pneg %p133
      %p140 = scmp.eq.s32.totalorder %s14, 1
      %p141 = por %p139, %p140
      %p142 = scmp.ne.s32.totalorder %s134, %s137
      %p143 = scmp.eq.s32.totalorder %s14, 0
      %p144 = por %p142, %p143
      %p145 = scmp.ne.s32.totalorder %s134, %s137
      %p146 = scmp.eq.s32.totalorder %s19, 1
      %p147 = por %p145, %p146
      %p148 = scmp.ne.s32.totalorder %s137, %s138
      %p149 = scmp.eq.s32.totalorder %s19, 0
      %p150 = por %p148, %p149
      %p151 = scmp.ne.s32.totalorder %s137, %s138
      %p152 = scmp.eq.s32.totalorder %s20, 1
      %p153 = por %p151, %p152
      %p155 = scmp.ne.s32.totalorder %s138, %s154
      %p156 = scmp.eq.s32.totalorder %s20, 0
      %p157 = por %p155, %p156
      %p158 = scmp.le.s32.totalorder 1, %s14
      %p159 = scmp.lt.s32.totalorder %s14, 3
      %p160 = pnand %p158, %p159
      %p161 = pneg %p160
      // Predicated region
      $region9: #{tpu_custom_call.1} parent=5 // pred_check
        _
      $region10: #{tpu_custom_call.1} parent=5 // pred_check_branch
        %163 = sbr.rel (%p160) target = $region12
      $region11: #{tpu_custom_call.1} parent=5 // pred_region
        %s164 = ssub.s32 %s14, 1
        // Predicated region
        $region13: #{tpu_custom_call.1} parent=11 // pred_check
          %p165 = pneg %p61
        $region14: #{tpu_custom_call.1} parent=11 // pred_check_branch
          %167 = sbr.rel (%p165) target = $region16
        $region15: #{tpu_custom_call.1} parent=11 // pred_region
          _
        $region16: #{tpu_custom_call.1} parent=11 // pred_fallthru
          _
        // Predicated region
        $region17: #{tpu_custom_call.1} parent=11 // pred_check
          %p168 = pneg %p82
        $region18: #{tpu_custom_call.1} parent=11 // pred_check_branch
          %170 = sbr.rel (%p168) target = $region20
        $region19: #{tpu_custom_call.1} parent=11 // pred_region
          _
        $region20: #{tpu_custom_call.1} parent=11 // pred_fallthru
          _
        // Predicated region
        $region21: #{tpu_custom_call.1} parent=11 // pred_check
          %p171 = pneg %p103
        $region22: #{tpu_custom_call.1} parent=11 // pred_check_branch
          %173 = sbr.rel (%p171) target = $region24
        $region23: #{tpu_custom_call.1} parent=11 // pred_region
          _
        $region24: #{tpu_custom_call.1} parent=11 // pred_fallthru
          _
        // Predicated region
        $region25: #{tpu_custom_call.1} parent=11 // pred_check
          %p174 = pneg %p124
        $region26: #{tpu_custom_call.1} parent=11 // pred_check_branch
          %176 = sbr.rel (%p174) target = $region28
        $region27: #{tpu_custom_call.1} parent=11 // pred_region
          _
        $region28: #{tpu_custom_call.1} parent=11 // pred_fallthru
          _
      $region12: #{tpu_custom_call.1} parent=5 // pred_fallthru
        _
      %p177 = scmp.lt.s32.totalorder %s14, 2
      // Predicated region
      $region29: #{tpu_custom_call.1} parent=5 // pred_check
        %p178 = pneg %p177
      $region30: #{tpu_custom_call.1} parent=5 // pred_check_branch
        %180 = sbr.rel (%p178) target = $region32
      $region31: #{tpu_custom_call.1} parent=5 // pred_region
        // Predicated region
        $region33: #{tpu_custom_call.1} parent=31 // pred_check
          %p181 = pneg %p34
        $region34: #{tpu_custom_call.1} parent=31 // pred_check_branch
          %183 = sbr.rel (%p181) target = $region36
        $region35: #{tpu_custom_call.1} parent=31 // pred_region
          %p184 = scmp.lt.s32.totalorder %s14, 1
          %s185 = scalar_select %p184, %s14, 1
          %s186 = smul.addr %s185, 4
          %s187 = smul.addr %s186, 8
          %s188 = scalar_lea.vmem %s0, %s187
        $region36: #{tpu_custom_call.1} parent=31 // pred_fallthru
          _
      $region32: #{tpu_custom_call.1} parent=5 // pred_fallthru
        _
      %p189 = scmp.le.s32.totalorder 1, %s14
      %p190 = scmp.lt.s32.totalorder %s14, 3
      %p191 = pnand %p189, %p190
      %p192 = pneg %p191
      // Predicated region
      $region37: #{tpu_custom_call.1} parent=5 // pred_check
        _
      $region38: #{tpu_custom_call.1} parent=5 // pred_check_branch
        %194 = sbr.rel (%p191) target = $region40
      $region39: #{tpu_custom_call.1} parent=5 // pred_region
        %s195 = ssub.s32 %s14, 1
        %p196 = scmp.lt.s32.totalorder %s19, 1
        %s197 = scalar_select %p196, %s19, 1
        %s198 = smul.addr %s197, 4
        %s199 = smul.addr %s198, 8
        %s200 = scalar_lea.vmem %s0, %s199
        %p201 = pneg %p40
        %p202 = pneg %p37
        %p203 = pneg %p61
        %p204 = pneg %p58
        %p205 = pneg %p82
        %p206 = pneg %p79
        %p207 = pneg %p103
        %p208 = pneg %p100
        %p209 = pneg %p124
        %p210 = pneg %p121
        %p211 = pneg %p150
        %p212 = pneg %p147
        %s213 = sand.u32 %s137, 1
        %s214 = scalar_lea.sflag [#allocation3], %s213
        %s215 = sand.u32 %s137, 1
        %s216 = smul.addr %s215, 32
        %s217 = scalar_lea.vmem [#allocation2], %s216
        %p218 = scmp.lt.s32.totalorder %s19, 1
        %s219 = scalar_select %p218, %s19, 1
        %s220 = smul.addr %s219, 4
        %s221 = smul.addr %s220, 8
        %s222 = scalar_lea.vmem %s0, %s221
        %v223 = vld [vmem:[%s1] sm:$0xff]
        %v224 = vld [vmem:[%s1 + $0x8] sm:$0xff]
        %v225 = vld [vmem:[%s1 + $0x10] sm:$0xff]
        %v226 = vld [vmem:[%s1 + $0x18] sm:$0xff]
        %v227 = vld [vmem:[%s2] sm:$0xff]
        %v228 = vld [vmem:[%s2 + $0x8] sm:$0xff]
        %v229 = vld [vmem:[%s2 + $0x10] sm:$0xff]
        %v230 = vld [vmem:[%s2 + $0x18] sm:$0xff]
        %v231 = vld [vmem:[%s4] sm:$0xff]
        %v232 = vld [vmem:[%s4 + $0x8] sm:$0xff]
        %v233 = vld [vmem:[%s4 + $0x10] sm:$0xff]
        %v234 = vld [vmem:[%s4 + $0x18] sm:$0xff]
        %v235 = vld [vmem:[%s3] sm:$0xff]
        %v236 = vld [vmem:[%s3 + $0x8] sm:$0xff]
        %v237 = vld [vmem:[%s3 + $0x10] sm:$0xff]
        %v238 = vld [vmem:[%s3 + $0x18] sm:$0xff]
        %v239 = vlaneseq
        %v240 = vand.u32 %v239, 127
        %vm241 = vcmp.lt.s32.totalorder %v240, 64
        %v242 = vsel %vm241, 1, 0
        %v243 = vcvt.s32.f32 %v242
        %v244 = vld [vmem:[%s222] sm:$0xff]
        %v245 = vld [vmem:[%s222 + $0x8] sm:$0xff]
        %v246 = vld [vmem:[%s222 + $0x10] sm:$0xff]
        %v247 = vld [vmem:[%s222 + $0x18] sm:$0xff]
        %v248 = vmul.f32 %v244, %v243
        %v249 = vmul.f32 %v245, %v243
        %v250 = vmul.f32 %v246, %v243
        %v251 = vmul.f32 %v247, %v243
        %252 = vadd.xlane.f32.xlu0 %v248
        %v253 = vpop.xlane.xlu0 %252
        %254 = vadd.xlane.f32.xlu0 %v249
        %v255 = vpop.xlane.xlu0 %254
        %256 = vadd.xlane.f32.xlu0 %v250
        %v257 = vpop.xlane.xlu0 %256
        %258 = vadd.xlane.f32.xlu0 %v251
        %v259 = vpop.xlane.xlu0 %258
        %v260 = vmul.f32 %v253, 0.015625
        %v261 = vmul.f32 %v255, 0.015625
        %v262 = vmul.f32 %v257, 0.015625
        %v263 = vmul.f32 %v259, 0.015625
        %v264 = vmul.f32 %v248, %v248
        %v265 = vmul.f32 %v249, %v249
        %v266 = vmul.f32 %v250, %v250
        %v267 = vmul.f32 %v251, %v251
        %268 = vadd.xlane.f32.xlu0 %v264
        %v269 = vpop.xlane.xlu0 %268
        %270 = vadd.xlane.f32.xlu0 %v265
        %v271 = vpop.xlane.xlu0 %270
        %272 = vadd.xlane.f32.xlu0 %v266
        %v273 = vpop.xlane.xlu0 %272
        %274 = vadd.xlane.f32.xlu0 %v267
        %v275 = vpop.xlane.xlu0 %274
        %v276 = vmul.f32 %v269, 0.015625
        %v277 = vmul.f32 %v271, 0.015625
        %v278 = vmul.f32 %v273, 0.015625
        %v279 = vmul.f32 %v275, 0.015625
        %v280 = vmul.f32 %v260, %v260
        %v281 = vmul.f32 %v261, %v261
        %v282 = vmul.f32 %v262, %v262
        %v283 = vmul.f32 %v263, %v263
        %v284 = vsub.f32 %v276, %v280
        %v285 = vsub.f32 %v277, %v281
        %v286 = vsub.f32 %v278, %v282
        %v287 = vsub.f32 %v279, %v283
        %v288 = vmax.f32 %v284, 0.0
        %v289 = vmax.f32 %v285, 0.0
        %v290 = vmax.f32 %v286, 0.0
        %v291 = vmax.f32 %v287, 0.0
        %v292 = vsub.f32 %v244, %v260
        %v293 = vsub.f32 %v245, %v261
        %v294 = vsub.f32 %v246, %v262
        %v295 = vsub.f32 %v247, %v263
        %v296 = vadd.f32 %v288, 1e-05
        %v297 = vadd.f32 %v289, 1e-05
        %v298 = vadd.f32 %v290, 1e-05
        %v299 = vadd.f32 %v291, 1e-05
        %v300 = vrsqrt.pop %v296
        %v301 = vmul.f32 %v300, %v296
        %v302 = vmul.f32 %v301, %v300
        %v303 = vmul.f32 0.5, %v302
        %v304 = vsub.f32 1.5, %v303
        %v305 = vmul.f32 %v300, %v304
        %vm306 = vweird.f32 %v296
        %vm307 = vweird.f32 %v300
        %vm308 = vmor %vm306, %vm307
        %v309 = vsel %vm308, %v300, %v305
        %v310 = vrsqrt.pop %v297
        %v311 = vmul.f32 %v310, %v297
        %v312 = vmul.f32 %v311, %v310
        %v313 = vmul.f32 0.5, %v312
        %v314 = vsub.f32 1.5, %v313
        %v315 = vmul.f32 %v310, %v314
        %vm316 = vweird.f32 %v297
        %vm317 = vweird.f32 %v310
        %vm318 = vmor %vm316, %vm317
        %v319 = vsel %vm318, %v310, %v315
        %v320 = vrsqrt.pop %v298
        %v321 = vmul.f32 %v320, %v298
        %v322 = vmul.f32 %v321, %v320
        %v323 = vmul.f32 0.5, %v322
        %v324 = vsub.f32 1.5, %v323
        %v325 = vmul.f32 %v320, %v324
        %vm326 = vweird.f32 %v298
        %vm327 = vweird.f32 %v320
        %vm328 = vmor %vm326, %vm327
        %v329 = vsel %vm328, %v320, %v325
        %v330 = vrsqrt.pop %v299
        %v331 = vmul.f32 %v330, %v299
        %v332 = vmul.f32 %v331, %v330
        %v333 = vmul.f32 0.5, %v332
        %v334 = vsub.f32 1.5, %v333
        %v335 = vmul.f32 %v330, %v334
        %vm336 = vweird.f32 %v299
        %vm337 = vweird.f32 %v330
        %vm338 = vmor %vm336, %vm337
        %v339 = vsel %vm338, %v330, %v335
        %v340 = vmul.f32 %v292, %v309
        %v341 = vmul.f32 %v293, %v319
        %v342 = vmul.f32 %v294, %v329
        %v343 = vmul.f32 %v295, %v339
        %vm344 = vcmp.gt.f32.partialorder %v340, 0.0
        %vm345 = vcmp.gt.f32.partialorder %v341, 0.0
        %vm346 = vcmp.gt.f32.partialorder %v342, 0.0
        %vm347 = vcmp.gt.f32.partialorder %v343, 0.0
        %v348 = vmin.f32 %v340, 0.0
        %v349 = vmin.f32 %v341, 0.0
        %v350 = vmin.f32 %v342, 0.0
        %v351 = vmin.f32 %v343, 0.0
        %v352 = vmul.f32 %v348, 1.442695
        %v353 = vpow.pop %v352
        %v354 = vmul.f32 %v349, 1.442695
        %v355 = vpow.pop %v354
        %v356 = vmul.f32 %v350, 1.442695
        %v357 = vpow.pop %v356
        %v358 = vmul.f32 %v351, 1.442695
        %v359 = vpow.pop %v358
        %v360 = vsub.f32 %v353, 1.0
        %v361 = vsub.f32 %v355, 1.0
        %v362 = vsub.f32 %v357, 1.0
        %v363 = vsub.f32 %v359, 1.0
        %v364 = vsel %vm344, %v340, %v360
        %v365 = vsel %vm345, %v341, %v361
        %v366 = vsel %vm346, %v342, %v362
        %v367 = vsel %vm347, %v343, %v363
        %v368 = vmul.f32 %v364, %v243
        %v369 = vmul.f32 %v365, %v243
        %v370 = vmul.f32 %v366, %v243
        %v371 = vmul.f32 %v367, %v243
        %376 = vrot.lane.b32.xlu0 %v368, 1
        %v377 = vpop.permute.xlu0 %376
        %378 = vrot.lane.b32.xlu0 %v369, 1
        %v379 = vpop.permute.xlu0 %378
        %380 = vrot.lane.b32.xlu0 %v370, 1
        %v381 = vpop.permute.xlu0 %380
        %382 = vrot.lane.b32.xlu0 %v371, 1
        %v383 = vpop.permute.xlu0 %382
        %vm388 = vcmask 7168
        %v389 = vsel %vm388, 0.0, %v377
        %v390 = vsel %vm388, 0.0, %v379
        %v391 = vsel %vm388, 0.0, %v381
        %v392 = vsel %vm388, 0.0, %v383
        %394 = vset.pattern.permute.xlu0 0
        %395 = vperm.xlu0 %394, %v223
        %v396 = vpop.permute.xlu0 %395
        %399 = vset.pattern.permute.xlu0 0
        %400 = vperm.xlu0 %399, %v224
        %v401 = vpop.permute.xlu0 %400
        %404 = vset.pattern.permute.xlu0 0
        %405 = vperm.xlu0 %404, %v225
        %v406 = vpop.permute.xlu0 %405
        %409 = vset.pattern.permute.xlu0 0
        %410 = vperm.xlu0 %409, %v226
        %v411 = vpop.permute.xlu0 %410
        %v413 = vmul.f32 %v396, %v389
        %v414 = vmul.f32 %v401, %v390
        %v415 = vmul.f32 %v406, %v391
        %v416 = vmul.f32 %v411, %v392
        %v417 = vadd.f32 %v413, 0.0
        %v418 = vadd.f32 %v414, 0.0
        %v419 = vadd.f32 %v415, 0.0
        %v420 = vadd.f32 %v416, 0.0
        %421 = vset.pattern.permute.xlu0 1
        %422 = vperm.xlu0 %421, %v223
        %v423 = vpop.permute.xlu0 %422
        %425 = vset.pattern.permute.xlu0 1
        %426 = vperm.xlu0 %425, %v224
        %v427 = vpop.permute.xlu0 %426
        %429 = vset.pattern.permute.xlu0 1
        %430 = vperm.xlu0 %429, %v225
        %v431 = vpop.permute.xlu0 %430
        %433 = vset.pattern.permute.xlu0 1
        %434 = vperm.xlu0 %433, %v226
        %v435 = vpop.permute.xlu0 %434
        %v437 = vmul.f32 %v423, %v368
        %v438 = vmul.f32 %v427, %v369
        %v439 = vmul.f32 %v431, %v370
        %v440 = vmul.f32 %v435, %v371
        %v441 = vadd.f32 %v417, %v437
        %v442 = vadd.f32 %v418, %v438
        %v443 = vadd.f32 %v419, %v439
        %v444 = vadd.f32 %v420, %v440
        %445 = vrot.lane.b32.xlu0 %v368, 127
        %v446 = vpop.permute.xlu0 %445
        %447 = vrot.lane.b32.xlu0 %v369, 127
        %v448 = vpop.permute.xlu0 %447
        %449 = vrot.lane.b32.xlu0 %v370, 127
        %v450 = vpop.permute.xlu0 %449
        %451 = vrot.lane.b32.xlu0 %v371, 127
        %v452 = vpop.permute.xlu0 %451
        %vm457 = vcmask 1039360
        %v458 = vsel %vm457, %v446, 0.0
        %v459 = vsel %vm457, %v448, 0.0
        %v460 = vsel %vm457, %v450, 0.0
        %v461 = vsel %vm457, %v452, 0.0
        %462 = vset.pattern.permute.xlu0 2
        %463 = vperm.xlu0 %462, %v223
        %v464 = vpop.permute.xlu0 %463
        %466 = vset.pattern.permute.xlu0 2
        %467 = vperm.xlu0 %466, %v224
        %v468 = vpop.permute.xlu0 %467
        %470 = vset.pattern.permute.xlu0 2
        %471 = vperm.xlu0 %470, %v225
        %v472 = vpop.permute.xlu0 %471
        %474 = vset.pattern.permute.xlu0 2
        %475 = vperm.xlu0 %474, %v226
        %v476 = vpop.permute.xlu0 %475
        %v478 = vmul.f32 %v464, %v458
        %v479 = vmul.f32 %v468, %v459
        %v480 = vmul.f32 %v472, %v460
        %v481 = vmul.f32 %v476, %v461
        %v482 = vadd.f32 %v441, %v478
        %v483 = vadd.f32 %v442, %v479
        %v484 = vadd.f32 %v443, %v480
        %v485 = vadd.f32 %v444, %v481
        %487 = vset.pattern.permute.xlu0 0
        %488 = vperm.xlu0 %487, %v227
        %v489 = vpop.permute.xlu0 %488
        %492 = vset.pattern.permute.xlu0 0
        %493 = vperm.xlu0 %492, %v228
        %v494 = vpop.permute.xlu0 %493
        %497 = vset.pattern.permute.xlu0 0
        %498 = vperm.xlu0 %497, %v229
        %v499 = vpop.permute.xlu0 %498
        %502 = vset.pattern.permute.xlu0 0
        %503 = vperm.xlu0 %502, %v230
        %v504 = vpop.permute.xlu0 %503
        %v506 = vadd.f32 %v482, %v489
        %v507 = vadd.f32 %v483, %v494
        %v508 = vadd.f32 %v484, %v499
        %v509 = vadd.f32 %v485, %v504
        %v510 = vmul.f32 %v506, %v243
        %v511 = vmul.f32 %v507, %v243
        %v512 = vmul.f32 %v508, %v243
        %v513 = vmul.f32 %v509, %v243
        %514 = vadd.xlane.f32.xlu0 %v510
        %v515 = vpop.xlane.xlu0 %514
        %516 = vadd.xlane.f32.xlu0 %v511
        %v517 = vpop.xlane.xlu0 %516
        %518 = vadd.xlane.f32.xlu0 %v512
        %v519 = vpop.xlane.xlu0 %518
        %520 = vadd.xlane.f32.xlu0 %v513
        %v521 = vpop.xlane.xlu0 %520
        %v522 = vmul.f32 %v515, 0.015625
        %v523 = vmul.f32 %v517, 0.015625
        %v524 = vmul.f32 %v519, 0.015625
        %v525 = vmul.f32 %v521, 0.015625
        %v526 = vmul.f32 %v510, %v510
        %v527 = vmul.f32 %v511, %v511
        %v528 = vmul.f32 %v512, %v512
        %v529 = vmul.f32 %v513, %v513
        %530 = vadd.xlane.f32.xlu0 %v526
        %v531 = vpop.xlane.xlu0 %530
        %532 = vadd.xlane.f32.xlu0 %v527
        %v533 = vpop.xlane.xlu0 %532
        %534 = vadd.xlane.f32.xlu0 %v528
        %v535 = vpop.xlane.xlu0 %534
        %536 = vadd.xlane.f32.xlu0 %v529
        %v537 = vpop.xlane.xlu0 %536
        %v538 = vmul.f32 %v531, 0.015625
        %v539 = vmul.f32 %v533, 0.015625
        %v540 = vmul.f32 %v535, 0.015625
        %v541 = vmul.f32 %v537, 0.015625
        %v542 = vmul.f32 %v522, %v522
        %v543 = vmul.f32 %v523, %v523
        %v544 = vmul.f32 %v524, %v524
        %v545 = vmul.f32 %v525, %v525
        %v546 = vsub.f32 %v538, %v542
        %v547 = vsub.f32 %v539, %v543
        %v548 = vsub.f32 %v540, %v544
        %v549 = vsub.f32 %v541, %v545
        %v550 = vmax.f32 %v546, 0.0
        %v551 = vmax.f32 %v547, 0.0
        %v552 = vmax.f32 %v548, 0.0
        %v553 = vmax.f32 %v549, 0.0
        %v554 = vsub.f32 %v506, %v522
        %v555 = vsub.f32 %v507, %v523
        %v556 = vsub.f32 %v508, %v524
        %v557 = vsub.f32 %v509, %v525
        %v558 = vadd.f32 %v550, 1e-05
        %v559 = vadd.f32 %v551, 1e-05
        %v560 = vadd.f32 %v552, 1e-05
        %v561 = vadd.f32 %v553, 1e-05
        %v562 = vrsqrt.pop %v558
        %v563 = vmul.f32 %v562, %v558
        %v564 = vmul.f32 %v563, %v562
        %v565 = vmul.f32 0.5, %v564
        %v566 = vsub.f32 1.5, %v565
        %v567 = vmul.f32 %v562, %v566
        %vm568 = vweird.f32 %v558
        %vm569 = vweird.f32 %v562
        %vm570 = vmor %vm568, %vm569
        %v571 = vsel %vm570, %v562, %v567
        %v572 = vrsqrt.pop %v559
        %v573 = vmul.f32 %v572, %v559
        %v574 = vmul.f32 %v573, %v572
        %v575 = vmul.f32 0.5, %v574
        %v576 = vsub.f32 1.5, %v575
        %v577 = vmul.f32 %v572, %v576
        %vm578 = vweird.f32 %v559
        %vm579 = vweird.f32 %v572
        %vm580 = vmor %vm578, %vm579
        %v581 = vsel %vm580, %v572, %v577
        %v582 = vrsqrt.pop %v560
        %v583 = vmul.f32 %v582, %v560
        %v584 = vmul.f32 %v583, %v582
        %v585 = vmul.f32 0.5, %v584
        %v586 = vsub.f32 1.5, %v585
        %v587 = vmul.f32 %v582, %v586
        %vm588 = vweird.f32 %v560
        %vm589 = vweird.f32 %v582
        %vm590 = vmor %vm588, %vm589
        %v591 = vsel %vm590, %v582, %v587
        %v592 = vrsqrt.pop %v561
        %v593 = vmul.f32 %v592, %v561
        %v594 = vmul.f32 %v593, %v592
        %v595 = vmul.f32 0.5, %v594
        %v596 = vsub.f32 1.5, %v595
        %v597 = vmul.f32 %v592, %v596
        %vm598 = vweird.f32 %v561
        %vm599 = vweird.f32 %v592
        %vm600 = vmor %vm598, %vm599
        %v601 = vsel %vm600, %v592, %v597
        %v602 = vmul.f32 %v554, %v571
        %v603 = vmul.f32 %v555, %v581
        %v604 = vmul.f32 %v556, %v591
        %v605 = vmul.f32 %v557, %v601
        %vm606 = vcmp.gt.f32.partialorder %v602, 0.0
        %vm607 = vcmp.gt.f32.partialorder %v603, 0.0
        %vm608 = vcmp.gt.f32.partialorder %v604, 0.0
        %vm609 = vcmp.gt.f32.partialorder %v605, 0.0
        %v610 = vmin.f32 %v602, 0.0
        %v611 = vmin.f32 %v603, 0.0
        %v612 = vmin.f32 %v604, 0.0
        %v613 = vmin.f32 %v605, 0.0
        %v614 = vmul.f32 %v610, 1.442695
        %v615 = vpow.pop %v614
        %v616 = vmul.f32 %v611, 1.442695
        %v617 = vpow.pop %v616
        %v618 = vmul.f32 %v612, 1.442695
        %v619 = vpow.pop %v618
        %v620 = vmul.f32 %v613, 1.442695
        %v621 = vpow.pop %v620
        %v622 = vsub.f32 %v615, 1.0
        %v623 = vsub.f32 %v617, 1.0
        %v624 = vsub.f32 %v619, 1.0
        %v625 = vsub.f32 %v621, 1.0
        %v626 = vsel %vm606, %v602, %v622
        %v627 = vsel %vm607, %v603, %v623
        %v628 = vsel %vm608, %v604, %v624
        %v629 = vsel %vm609, %v605, %v625
        %vm630 = vcmask 261120
        %v632 = vsel %vm630, %v235, 0
        %v635 = vsel %vm630, %v236, 0
        %v638 = vsel %vm630, %v237, 0
        %v641 = vsel %vm630, %v238, 0
        %643 = vmatpush.msra.mxu0 0.0
        %644 = vmatpush.msra.mxu0 0.0
        %645 = vmatpush.msra.mxu0 0.0
        %646 = vmatpush.msra.mxu0 0.0
        %647 = vmatpush.msra.mxu0 0.0
        %648 = vmatpush.msra.mxu0 0.0
        %649 = vmatpush.msra.mxu0 0.0
        %650 = vmatpush.msra.mxu0 0.0
        %651 = vmatpush.msra.mxu0 0.0
        %652 = vmatpush.msra.mxu0 0.0
        %653 = vmatpush.msra.mxu0 0.0
        %654 = vmatpush.msra.mxu0 0.0
        %655 = vmatpush.msra.mxu0 %v629
        %656 = vmatpush.msra.mxu0 %v628
        %657 = vmatpush.msra.mxu0 %v627
        %658 = vmatpush.msra.mxu0 %v626
        %659 = vmatmul.f32.gmra.mxu0 %v632
        %v660 = vpop.f32.mrf.mxu0
        %v661 = vadd.f32 0.0, %v660
        %662 = vmatmul.f32.gmra.mxu0 %v635
        %v663 = vpop.f32.mrf.mxu0
        %v664 = vadd.f32 0.0, %v663
        %665 = vmatmul.f32.gmra.mxu0 %v638
        %v666 = vpop.f32.mrf.mxu0
        %v667 = vadd.f32 0.0, %v666
        %668 = vmatmul.f32.gmra.mxu0 %v641
        %v669 = vpop.f32.mrf.mxu0
        %v670 = vadd.f32 0.0, %v669
        %671 = vdwg.mxu0
        %v672 = vadd.f32 %v244, %v661
        %v673 = vadd.f32 %v245, %v664
        %v674 = vadd.f32 %v246, %v667
        %v675 = vadd.f32 %v247, %v670
        %677 = vset.pattern.permute.xlu0 0
        %678 = vperm.xlu0 %677, %v231
        %v679 = vpop.permute.xlu0 %678
        %682 = vset.pattern.permute.xlu0 0
        %683 = vperm.xlu0 %682, %v232
        %v684 = vpop.permute.xlu0 %683
        %687 = vset.pattern.permute.xlu0 0
        %688 = vperm.xlu0 %687, %v233
        %v689 = vpop.permute.xlu0 %688
        %692 = vset.pattern.permute.xlu0 0
        %693 = vperm.xlu0 %692, %v234
        %v694 = vpop.permute.xlu0 %693
        %v696 = vadd.f32 %v672, %v679
        %v697 = vadd.f32 %v673, %v684
        %v698 = vadd.f32 %v674, %v689
        %v699 = vadd.f32 %v675, %v694
        %700 = vst [vmem:[%s217] sm:$0xff] %v696
        %701 = vst [vmem:[%s217 + $0x8] sm:$0xff] %v697
        %702 = vst [vmem:[%s217 + $0x10] sm:$0xff] %v698
        %703 = vst [vmem:[%s217 + $0x18] sm:$0xff] %v699
        %s704 = sand.u32 %s137, 1
        %s705 = scalar_lea.sflag [#allocation3], %s704
        %s706 = sand.u32 %s137, 1
        %s707 = smul.addr %s706, 32
        %s708 = scalar_lea.vmem [#allocation2], %s707
        // Predicated region
        $region41: #{tpu_custom_call.1} parent=39 // pred_check
          %p709 = pneg %p147
        $region42: #{tpu_custom_call.1} parent=39 // pred_check_branch
          %711 = sbr.rel (%p709) target = $region44
        $region43: #{tpu_custom_call.1} parent=39 // pred_region
          %713 = vsyncadd %s705, 0
          %s714 = smul.addr %s19, 4
          %s715 = smul.addr %s714, 8
          %s716 = scalar_lea.hbm %s5, %s715
          %s717 = sshll.u32 %s708, 4
          %s718 = int_to_ptr.vmem [resolvable:$true] %s717
          %s719 = sshll.u32 %s716, 4
          %s720 = int_to_ptr.hbm [resolvable:$true] %s719
          %725 = dma.vmem_to_hbm [thread:$0]  %s718, 512, %s720, %s705, 128, 128, 8
        $region44: #{tpu_custom_call.1} parent=39 // pred_fallthru
          _
      $region40: #{tpu_custom_call.1} parent=5 // pred_fallthru
        _
      %p726 = scmp.le.s32.totalorder 2, %s14
      // Predicated region
      $region45: #{tpu_custom_call.1} parent=5 // pred_check
        %p727 = pneg %p726
      $region46: #{tpu_custom_call.1} parent=5 // pred_check_branch
        %729 = sbr.rel (%p727) target = $region48
      $region47: #{tpu_custom_call.1} parent=5 // pred_region
        %s730 = ssub.s32 %s14, 2
        // Predicated region
        $region49: #{tpu_custom_call.1} parent=47 // pred_check
          %p731 = pneg %p153
        $region50: #{tpu_custom_call.1} parent=47 // pred_check_branch
          %733 = sbr.rel (%p731) target = $region52
        $region51: #{tpu_custom_call.1} parent=47 // pred_region
          %s734 = sand.u32 %s138, 1
          %s735 = scalar_lea.sflag [#allocation3], %s734
          %s736 = sand.u32 %s138, 1
          %s737 = smul.addr %s736, 32
          %s738 = scalar_lea.vmem [#allocation2], %s737
          %740 = dma.done %s735, 512
        $region52: #{tpu_custom_call.1} parent=47 // pred_fallthru
          _
      $region48: #{tpu_custom_call.1} parent=5 // pred_fallthru
        _
    $region6: #{tpu_custom_call.1} parent=1 // loop_footer
      %s18 = sadd.s32 1, %s14
    $region7: #{tpu_custom_call.1} parent=1 // loop_footer_branch
      %13 = sbr.rel target = $region3
    $region8: #{tpu_custom_call.1} parent=1 // loop_exit
      _
    %741 = vsyncpa [#allocation3], 1
    %s742 = scalar_lea.sflag [#allocation3], 1
    %743 = vsyncpa %s742, 1

</llo_original>
